<compile_context>
chip_gen: v7x
topology: tpu7x:2x2x1
jax: 0.10.0
libtpu: 0.0.40
codegen_flags: <defaults>
</compile_context>

<pallas_src>
import math

import jax
import jax.numpy as jnp
from jax.experimental import pallas as pl
from jax.experimental.pallas import tpu as pltpu


def _basic_head_kernel(xt_ref, w1_ref, b1_ref, w2_ref, b2_ref, ot_ref):
    # fc1 (transposed): hT = W1 @ xT + b1 -> [hidden, TN], batch on lanes.
    h = jnp.dot(w1_ref[...], xt_ref[...], preferred_element_type=jnp.float32)
    h = jnp.maximum(h + b1_ref[...], 0.0)            # bias + ReLU on dense vregs
    # dropout(p, training=False) -> identity (eval mode).
    # fc2 (transposed): oT = W2 @ hT + b2 -> [output, TN].
    t = jnp.dot(w2_ref[...], h, preferred_element_type=jnp.float32) + b2_ref[...]
    # transform = exp (EUP); store lane-dense [output, TN] directly -- no t.T.
    ot_ref[...] = jnp.exp(t).astype(ot_ref.dtype)


def _round_up(v, m):
    return ((v + m - 1) // m) * m


def basic_head_forward_t(xt, w1, b1, w2, b2, *, block_rows=8192,
                         min_grid_steps=2, use_bf16=False):
    """Lane-dense primary path.

    xt: [input_dim, N]            (features on sublanes, batch on lanes)
    w1: [hidden_dim, input_dim]   (nn.Linear fc1.weight layout)
    b1: [hidden_dim]
    w2: [output_dim, hidden_dim]  (nn.Linear fc2.weight layout)
    b2: [output_dim]
    returns [output_dim, N] float32.
    """
    input_dim, n = xt.shape
    hidden_dim = w1.shape[0]
    output_dim = w2.shape[0]
    assert w1.shape == (hidden_dim, input_dim)
    assert w2.shape == (output_dim, hidden_dim)
    assert b1.shape == (hidden_dim,)
    assert b2.shape == (output_dim,)

    # Bias columns broadcast over the lane (batch) axis inside the kernel.
    b1c = b1.reshape(hidden_dim, 1).astype(jnp.float32)
    b2c = b2.reshape(output_dim, 1).astype(jnp.float32)

    if use_bf16:
        # Optional bandwidth saver (esp. v5e); accumulation stays f32.
        xt = xt.astype(jnp.bfloat16)
        w1 = w1.astype(jnp.bfloat16)
        w2 = w2.astype(jnp.bfloat16)

    # Batch tile: multiple of 128, large by default (per-step VMEM is tiny),
    # but capped so the parallel grid has >= min_grid_steps steps (v7x has
    # 2 TensorCores to feed).  No padding of x: Pallas masks the ragged tail.
    tn_cap = max(128, _round_up(block_rows, 128))
    tn = max(128, min(tn_cap, _round_up(pl.cdiv(n, min_grid_steps), 128)))
    grid = (pl.cdiv(n, tn),)

    cost = pl.CostEstimate(
        flops=2 * n * (input_dim * hidden_dim + hidden_dim * output_dim),
        transcendentals=n * output_dim,
        bytes_accessed=int(
            xt.dtype.itemsize * n * input_dim          # xT read
            + 4 * n * output_dim                       # oT write
            + w1.dtype.itemsize * input_dim * hidden_dim
            + w2.dtype.itemsize * hidden_dim * output_dim
            + 4 * (hidden_dim + output_dim)            # biases
        ),
    )

    out_t = pl.pallas_call(
        _basic_head_kernel,
        out_shape=jax.ShapeDtypeStruct((output_dim, n), jnp.float32),
        grid=grid,
        in_specs=[
            pl.BlockSpec((input_dim, tn), lambda i: (0, i)),           # xT tile
            pl.BlockSpec((hidden_dim, input_dim), lambda i: (0, 0)),   # W1 (resident)
            pl.BlockSpec((hidden_dim, 1), lambda i: (0, 0)),           # b1 column
            pl.BlockSpec((output_dim, hidden_dim), lambda i: (0, 0)),  # W2 (resident)
            pl.BlockSpec((output_dim, 1), lambda i: (0, 0)),           # b2 column
        ],
        out_specs=pl.BlockSpec((output_dim, tn), lambda i: (0, i)),    # lane-dense
        compiler_params=pltpu.CompilerParams(
            dimension_semantics=("parallel",),
        ),
        cost_estimate=cost,
    )(xt, w1, b1c, w2, b2c)
    return out_t


def basic_head_forward(x, w1, b1, w2, b2, **kwargs):
    """Module-API convenience: x [N, input_dim] -> [N, output_dim].

    The two boundary transposes here are pure layout plumbing (extra XLA
    copies on a memory-bound kernel); callers that can provide features-major
    x and/or consume [output_dim, N] should use basic_head_forward_t directly.
    """
    out_t = basic_head_forward_t(x.T, w1, b1, w2, b2, **kwargs)
    return out_t.T


def reference_forward(x, w1, b1, w2, b2):
    # Pure-JAX reference with nn.Linear-layout weights.
    h = jnp.maximum(x @ w1.T + b1, 0.0)
    return jnp.exp(h @ w2.T + b2)


if __name__ == "__main__":
    # Module config: input_dim=32, output_dim=8 -> hidden_dim = sqrt(32*8) = 16
    input_dim = 32
    output_dim = 8
    hidden_dim = int(math.sqrt(input_dim * output_dim))
    batch = 200            # ragged (not a multiple of 128) -> exercises masked tail
    drop_rate = 0.1        # unused at inference (training=False)
    # TODO(synk): training-mode dropout (RNG mask), the stateful init_norm
    # branch, and arbitrary user `transform` callables are not implemented;
    # transform is hardcoded to exp.

    key = jax.random.PRNGKey(0)
    kx, kw1, kb1, kw2, kb2 = jax.random.split(key, 5)

    x = jax.random.normal(kx, (batch, input_dim), dtype=jnp.float32)

    # nn.Linear-style init in nn.Linear storage layout [out_features, in_features].
    bound1 = 1.0 / math.sqrt(input_dim)
    w1 = jax.random.uniform(kw1, (hidden_dim, input_dim), jnp.float32, -bound1, bound1)
    b1 = jax.random.uniform(kb1, (hidden_dim,), jnp.float32, -bound1, bound1)
    bound2 = 1.0 / math.sqrt(hidden_dim)
    w2 = jax.random.uniform(kw2, (output_dim, hidden_dim), jnp.float32, -bound2, bound2)
    b2 = jax.random.uniform(kb2, (output_dim,), jnp.float32, -bound2, bound2)

    ref = reference_forward(x, w1, b1, w2, b2)

    # Primary lane-dense path: features-major input, [output_dim, N] output.
    # min_grid_steps=2 gives a 2-step pipelined grid even at batch=200.
    out_t = basic_head_forward_t(x.T, w1, b1, w2, b2, min_grid_steps=2)
    out_t = jax.block_until_ready(out_t)
    assert out_t.shape == (output_dim, batch)
    assert jnp.allclose(out_t.T, ref, atol=1e-5, rtol=1e-5), "mismatch (lane-dense path)"

    # Module-API wrapper ([N, in] -> [N, out]) for drop-in equivalence.
    out = jax.block_until_ready(basic_head_forward(x, w1, b1, w2, b2))
    assert out.shape == (batch, output_dim)
    assert jnp.allclose(out, ref, atol=1e-5, rtol=1e-5), "mismatch (module-API path)"

    print("KERNEL_OK")
</pallas_src>

<mosaic_0001>
module attributes {stable_mosaic.version = 11 : i64} {
  func.func @_basic_head_kernel(%arg0: i32, %arg1: memref<32x128xf32, #tpu.memory_space<vmem>>, %arg2: memref<16x32xf32, #tpu.memory_space<vmem>>, %arg3: memref<16x1xf32, #tpu.memory_space<vmem>>, %arg4: memref<8x16xf32, #tpu.memory_space<vmem>>, %arg5: memref<8x1xf32, #tpu.memory_space<vmem>>, %arg6: memref<8x128xf32, #tpu.memory_space<vmem>>) attributes {dimension_semantics = [#tpu.dimension_semantics<parallel>], iteration_bounds = array<i64: 2>, scalar_prefetch = 0 : i64, scratch_operands = 0 : i64, tpu.core_type = #tpu.core_type<tc>, window_params = [{transform_indices = @transform_0, window_bounds = array<i64: 32, 128>}, {pipeline_mode = #tpu.pipeline_mode<synchronous>, transform_indices = @transform_1, window_bounds = array<i64: 16, 32>}, {pipeline_mode = #tpu.pipeline_mode<synchronous>, transform_indices = @transform_2, window_bounds = array<i64: 16, 1>}, {pipeline_mode = #tpu.pipeline_mode<synchronous>, transform_indices = @transform_3, window_bounds = array<i64: 8, 16>}, {pipeline_mode = #tpu.pipeline_mode<synchronous>, transform_indices = @transform_4, window_bounds = array<i64: 8, 1>}, {transform_indices = @transform_5, window_bounds = array<i64: 8, 128>}]} {
    %c0 = arith.constant 0 : index
    %c0_0 = arith.constant 0 : index
    %0 = vector.load %arg2[%c0, %c0_0] : memref<16x32xf32, #tpu.memory_space<vmem>>, vector<16x32xf32>
    %c0_1 = arith.constant 0 : index
    %c0_2 = arith.constant 0 : index
    %1 = vector.load %arg1[%c0_1, %c0_2] : memref<32x128xf32, #tpu.memory_space<vmem>>, vector<32x128xf32>
    %cst = arith.constant dense<0.000000e+00> : vector<16x128xf32>
    %2 = tpu.matmul %0, %1, %cst {dimension_numbers = #tpu.dot_dimension_numbers<[1], [0], [0], [1], [0, 0, 1, 1], [], []>} : vector<16x32xf32>, vector<32x128xf32>, vector<16x128xf32> -> vector<16x128xf32>
    %c0_3 = arith.constant 0 : index
    %c0_4 = arith.constant 0 : index
    %3 = vector.load %arg3[%c0_3, %c0_4] : memref<16x1xf32, #tpu.memory_space<vmem>>, vector<16x1xf32>
    %4 = vector.broadcast %3 : vector<16x1xf32> to vector<16x128xf32>
    %5 = arith.addf %2, %4 : vector<16x128xf32>
    %cst_5 = arith.constant 0.000000e+00 : f32
    %6 = vector.broadcast %cst_5 : f32 to vector<16x128xf32>
    %7 = arith.maximumf %5, %6 : vector<16x128xf32>
    %c0_6 = arith.constant 0 : index
    %c0_7 = arith.constant 0 : index
    %8 = vector.load %arg4[%c0_6, %c0_7] : memref<8x16xf32, #tpu.memory_space<vmem>>, vector<8x16xf32>
    %cst_8 = arith.constant dense<0.000000e+00> : vector<8x128xf32>
    %9 = tpu.matmul %8, %7, %cst_8 {dimension_numbers = #tpu.dot_dimension_numbers<[1], [0], [0], [1], [0, 0, 1, 1], [], []>} : vector<8x16xf32>, vector<16x128xf32>, vector<8x128xf32> -> vector<8x128xf32>
    %c0_9 = arith.constant 0 : index
    %c0_10 = arith.constant 0 : index
    %10 = vector.load %arg5[%c0_9, %c0_10] : memref<8x1xf32, #tpu.memory_space<vmem>>, vector<8x1xf32>
    %11 = vector.broadcast %10 : vector<8x1xf32> to vector<8x128xf32>
    %12 = arith.addf %9, %11 : vector<8x128xf32>
    %13 = math.exp %12 : vector<8x128xf32>
    %c0_11 = arith.constant 0 : index
    %c0_12 = arith.constant 0 : index
    %14 = vector.load %arg6[%c0_11, %c0_12] : memref<8x128xf32, #tpu.memory_space<vmem>>, vector<8x128xf32>
    tpu.vector_store %arg6[%c0_11, %c0_12], %13 {strides = array<i32>} : memref<8x128xf32, #tpu.memory_space<vmem>>, vector<8x128xf32>,
    return
  }
  func.func @transform_0(%arg0: i32) -> (i32, i32) {
    %c0_i32 = arith.constant 0 : i32
    %c0_i32_0 = arith.constant 0 : i32
    return %c0_i32, %arg0 : i32, i32
  }
  func.func @transform_1(%arg0: i32) -> (i32, i32) {
    %c0_i32 = arith.constant 0 : i32
    %c0_i32_0 = arith.constant 0 : i32
    %c0_i32_1 = arith.constant 0 : i32
    return %c0_i32, %c0_i32_0 : i32, i32
  }
  func.func @transform_2(%arg0: i32) -> (i32, i32) {
    %c0_i32 = arith.constant 0 : i32
    %c0_i32_0 = arith.constant 0 : i32
    %c0_i32_1 = arith.constant 0 : i32
    return %c0_i32, %c0_i32_0 : i32, i32
  }
  func.func @transform_3(%arg0: i32) -> (i32, i32) {
    %c0_i32 = arith.constant 0 : i32
    %c0_i32_0 = arith.constant 0 : i32
    %c0_i32_1 = arith.constant 0 : i32
    return %c0_i32, %c0_i32_0 : i32, i32
  }
  func.func @transform_4(%arg0: i32) -> (i32, i32) {
    %c0_i32 = arith.constant 0 : i32
    %c0_i32_0 = arith.constant 0 : i32
    %c0_i32_1 = arith.constant 0 : i32
    return %c0_i32, %c0_i32_0 : i32, i32
  }
  func.func @transform_5(%arg0: i32) -> (i32, i32) {
    %c0_i32 = arith.constant 0 : i32
    %c0_i32_0 = arith.constant 0 : i32
    return %c0_i32, %arg0 : i32, i32
  }
}

</mosaic_0001>

<llo_original>
// kernel: tpu_custom_call.1
$region0: #{tpu_custom_call.1}
  #allocation0 [shape = 'u32[]', space=smem, size = 0x4, offset = 0x4, fixed_abs, tag = 'smem constant byte address 0x4 - core index']
  #allocation1 [shape = 'u32[144,128]{1,0:T(1,128)}', space=vmem, size = 0x12000, scoped, tag = 'internal scratch']
  %s0 = inlined_call_operand.hbm [shape: f32[32,200], index: 0, kind: input, shape index: {}]
  %s1 = inlined_call_operand.vmem [shape: f32[16,32], index: 1, kind: input, shape index: {}]
  %s2 = inlined_call_operand.vmem [shape: f32[16,1], index: 2, kind: input, shape index: {}]
  %s3 = inlined_call_operand.vmem [shape: f32[8,16], index: 3, kind: input, shape index: {}]
  %s4 = inlined_call_operand.vmem [shape: f32[8,1], index: 4, kind: input, shape index: {}]
  %s5 = inlined_call_operand.hbm [shape: f32[8,200], index: 5, kind: output, shape index: {}]
  %s6 = sld [smem:[#allocation0]]
  $region57: #{tpu_custom_call.1} parent=0
    _
  %s8 = ssub.s32 1, %s6
  %s9 = scalar_select 0, %s8, %s6
  $region1: #{tpu_custom_call.1} parent=0
    #allocation2 [shape = 'u8[32768]{0}', space=vmem, size = 0x8000, scoped, tag = 'input window, operand 0']
    #allocation3 [shape = 's32[2]{0}', space=sflag, size = 0x8, scoped, tag = 'scoped memory for tpu_custom_call.1']
    #allocation4 [shape = 's32[2]{0}', space=sflag, size = 0x8, scoped, tag = 'scoped memory for tpu_custom_call.1']
    #allocation5 [shape = 'u8[8192]{0}', space=vmem, size = 0x2000, scoped, tag = 'output window, operand 0']
    %10 = vsyncpa [#allocation3], 0
    %s11 = scalar_lea.sflag [#allocation3], 1
    %12 = vsyncpa %s11, 0
    %13 = vsyncpa [#allocation4], 0
    %s14 = scalar_lea.sflag [#allocation4], 1
    %15 = vsyncpa %s14, 0
    loop: start=0, step=1, limit=4
    $region2: #{tpu_custom_call.1} parent=1 // loop_pre_header
      _
    $region3: #{tpu_custom_call.1} parent=1 // loop_header
      %s17 = sphi 0, %s21
      %p18 = scmp.ge.s32.totalorder %s17, 4
      %s27 = sphi 0, %s29
      %s30 = sphi 0, %s27
      %s31 = sphi 0, %s30
      %s47 = sphi 0, %s31
      %s51 = sphi 0, %s51
      %s53 = sphi 0, %s51
      %s54 = sphi 0, %s53
      %s68 = sphi 0, %s54
      %s72 = sphi 0, %s72
      %s74 = sphi 0, %s72
      %s75 = sphi 0, %s74
      %s89 = sphi 0, %s75
      %s93 = sphi 0, %s93
      %s95 = sphi 0, %s93
      %s96 = sphi 0, %s95
      %s110 = sphi 0, %s96
      %s114 = sphi 0, %s114
      %s116 = sphi 0, %s114
      %s117 = sphi 0, %s116
      %s131 = sphi 0, %s117
      %s137 = sphi 0, %s139
      %s140 = sphi 0, %s137
      %s141 = sphi 0, %s140
      %s157 = sphi 0, %s141
    $region4: #{tpu_custom_call.1} parent=1 // loop_header_branch
      %20 = sbr.rel (%p18) target = $region8
    $region5: #{tpu_custom_call.1} parent=1 // loop_body
      %s22 = ssub.s32 %s17, 1
      %s23 = ssub.s32 %s17, 2
      %s24 = sadd.s32 %s17, 1
      %s25 = ssub.s32 %s17, %s24
      %p26 = scmp.eq.s32.totalorder %s25, 0
      %s28 = sadd.s32 %s27, 1
      %s29 = scalar_select %p26, %s27, %s28
      %p32 = pneg %p26
      %p33 = scmp.eq.s32.totalorder %s17, 1
      %p34 = por %p32, %p33
      %p35 = scmp.ne.s32.totalorder %s27, %s30
      %p36 = scmp.eq.s32.totalorder %s17, 0
      %p37 = por %p35, %p36
      %p38 = scmp.ne.s32.totalorder %s27, %s30
      %p39 = scmp.eq.s32.totalorder %s22, 1
      %p40 = por %p38, %p39
      %p41 = scmp.ne.s32.totalorder %s30, %s31
      %p42 = scmp.eq.s32.totalorder %s22, 0
      %p43 = por %p41, %p42
      %p44 = scmp.ne.s32.totalorder %s30, %s31
      %p45 = scmp.eq.s32.totalorder %s23, 1
      %p46 = por %p44, %p45
      %p48 = scmp.ne.s32.totalorder %s31, %s47
      %p49 = scmp.eq.s32.totalorder %s23, 0
      %p50 = por %p48, %p49
      %s52 = sadd.s32 %s51, 1
      %p55 = scmp.eq.s32.totalorder %s17, 1
      %p56 = scmp.ne.s32.totalorder %s51, %s53
      %p57 = scmp.eq.s32.totalorder %s17, 0
      %p58 = por %p56, %p57
      %p59 = scmp.ne.s32.totalorder %s51, %s53
      %p60 = scmp.eq.s32.totalorder %s22, 1
      %p61 = por %p59, %p60
      %p62 = scmp.ne.s32.totalorder %s53, %s54
      %p63 = scmp.eq.s32.totalorder %s22, 0
      %p64 = por %p62, %p63
      %p65 = scmp.ne.s32.totalorder %s53, %s54
      %p66 = scmp.eq.s32.totalorder %s23, 1
      %p67 = por %p65, %p66
      %p69 = scmp.ne.s32.totalorder %s54, %s68
      %p70 = scmp.eq.s32.totalorder %s23, 0
      %p71 = por %p69, %p70
      %s73 = sadd.s32 %s72, 1
      %p76 = scmp.eq.s32.totalorder %s17, 1
      %p77 = scmp.ne.s32.totalorder %s72, %s74
      %p78 = scmp.eq.s32.totalorder %s17, 0
      %p79 = por %p77, %p78
      %p80 = scmp.ne.s32.totalorder %s72, %s74
      %p81 = scmp.eq.s32.totalorder %s22, 1
      %p82 = por %p80, %p81
      %p83 = scmp.ne.s32.totalorder %s74, %s75
      %p84 = scmp.eq.s32.totalorder %s22, 0
      %p85 = por %p83, %p84
      %p86 = scmp.ne.s32.totalorder %s74, %s75
      %p87 = scmp.eq.s32.totalorder %s23, 1
      %p88 = por %p86, %p87
      %p90 = scmp.ne.s32.totalorder %s75, %s89
      %p91 = scmp.eq.s32.totalorder %s23, 0
      %p92 = por %p90, %p91
      %s94 = sadd.s32 %s93, 1
      %p97 = scmp.eq.s32.totalorder %s17, 1
      %p98 = scmp.ne.s32.totalorder %s93, %s95
      %p99 = scmp.eq.s32.totalorder %s17, 0
      %p100 = por %p98, %p99
      %p101 = scmp.ne.s32.totalorder %s93, %s95
      %p102 = scmp.eq.s32.totalorder %s22, 1
      %p103 = por %p101, %p102
      %p104 = scmp.ne.s32.totalorder %s95, %s96
      %p105 = scmp.eq.s32.totalorder %s22, 0
      %p106 = por %p104, %p105
      %p107 = scmp.ne.s32.totalorder %s95, %s96
      %p108 = scmp.eq.s32.totalorder %s23, 1
      %p109 = por %p107, %p108
      %p111 = scmp.ne.s32.totalorder %s96, %s110
      %p112 = scmp.eq.s32.totalorder %s23, 0
      %p113 = por %p111, %p112
      %s115 = sadd.s32 %s114, 1
      %p118 = scmp.eq.s32.totalorder %s17, 1
      %p119 = scmp.ne.s32.totalorder %s114, %s116
      %p120 = scmp.eq.s32.totalorder %s17, 0
      %p121 = por %p119, %p120
      %p122 = scmp.ne.s32.totalorder %s114, %s116
      %p123 = scmp.eq.s32.totalorder %s22, 1
      %p124 = por %p122, %p123
      %p125 = scmp.ne.s32.totalorder %s116, %s117
      %p126 = scmp.eq.s32.totalorder %s22, 0
      %p127 = por %p125, %p126
      %p128 = scmp.ne.s32.totalorder %s116, %s117
      %p129 = scmp.eq.s32.totalorder %s23, 1
      %p130 = por %p128, %p129
      %p132 = scmp.ne.s32.totalorder %s117, %s131
      %p133 = scmp.eq.s32.totalorder %s23, 0
      %p134 = por %p132, %p133
      %s135 = ssub.s32 %s17, %s24
      %p136 = scmp.eq.s32.totalorder %s135, 0
      %s138 = sadd.s32 %s137, 1
      %s139 = scalar_select %p136, %s137, %s138
      %p142 = pneg %p136
      %p143 = scmp.eq.s32.totalorder %s17, 1
      %p144 = por %p142, %p143
      %p145 = scmp.ne.s32.totalorder %s137, %s140
      %p146 = scmp.eq.s32.totalorder %s17, 0
      %p147 = por %p145, %p146
      %p148 = scmp.ne.s32.totalorder %s137, %s140
      %p149 = scmp.eq.s32.totalorder %s22, 1
      %p150 = por %p148, %p149
      %p151 = scmp.ne.s32.totalorder %s140, %s141
      %p152 = scmp.eq.s32.totalorder %s22, 0
      %p153 = por %p151, %p152
      %p154 = scmp.ne.s32.totalorder %s140, %s141
      %p155 = scmp.eq.s32.totalorder %s23, 1
      %p156 = por %p154, %p155
      %p158 = scmp.ne.s32.totalorder %s141, %s157
      %p159 = scmp.eq.s32.totalorder %s23, 0
      %p160 = por %p158, %p159
      %p161 = scmp.le.s32.totalorder 1, %s17
      %p162 = scmp.lt.s32.totalorder %s17, 3
      %p163 = pnand %p161, %p162
      %p164 = pneg %p163
      // Predicated region
      $region9: #{tpu_custom_call.1} parent=5 // pred_check
        _
      $region10: #{tpu_custom_call.1} parent=5 // pred_check_branch
        %166 = sbr.rel (%p163) target = $region12
      $region11: #{tpu_custom_call.1} parent=5 // pred_region
        %s167 = ssub.s32 %s17, 1
        // Predicated region
        $region13: #{tpu_custom_call.1} parent=11 // pred_check
          %p168 = pneg %p64
        $region14: #{tpu_custom_call.1} parent=11 // pred_check_branch
          %170 = sbr.rel (%p168) target = $region16
        $region15: #{tpu_custom_call.1} parent=11 // pred_region
          _
        $region16: #{tpu_custom_call.1} parent=11 // pred_fallthru
          _
        // Predicated region
        $region17: #{tpu_custom_call.1} parent=11 // pred_check
          %p171 = pneg %p85
        $region18: #{tpu_custom_call.1} parent=11 // pred_check_branch
          %173 = sbr.rel (%p171) target = $region20
        $region19: #{tpu_custom_call.1} parent=11 // pred_region
          _
        $region20: #{tpu_custom_call.1} parent=11 // pred_fallthru
          _
        // Predicated region
        $region21: #{tpu_custom_call.1} parent=11 // pred_check
          %p174 = pneg %p106
        $region22: #{tpu_custom_call.1} parent=11 // pred_check_branch
          %176 = sbr.rel (%p174) target = $region24
        $region23: #{tpu_custom_call.1} parent=11 // pred_region
          _
        $region24: #{tpu_custom_call.1} parent=11 // pred_fallthru
          _
        // Predicated region
        $region25: #{tpu_custom_call.1} parent=11 // pred_check
          %p177 = pneg %p127
        $region26: #{tpu_custom_call.1} parent=11 // pred_check_branch
          %179 = sbr.rel (%p177) target = $region28
        $region27: #{tpu_custom_call.1} parent=11 // pred_region
          _
        $region28: #{tpu_custom_call.1} parent=11 // pred_fallthru
          _
      $region12: #{tpu_custom_call.1} parent=5 // pred_fallthru
        _
      %p180 = scmp.lt.s32.totalorder %s17, 2
      // Predicated region
      $region29: #{tpu_custom_call.1} parent=5 // pred_check
        %p181 = pneg %p180
      $region30: #{tpu_custom_call.1} parent=5 // pred_check_branch
        %183 = sbr.rel (%p181) target = $region32
      $region31: #{tpu_custom_call.1} parent=5 // pred_region
        // Predicated region
        $region33: #{tpu_custom_call.1} parent=31 // pred_check
          %p184 = pneg %p37
        $region34: #{tpu_custom_call.1} parent=31 // pred_check_branch
          %186 = sbr.rel (%p184) target = $region36
        $region35: #{tpu_custom_call.1} parent=31 // pred_region
          %s187 = sand.u32 %s27, 1
          %s188 = scalar_lea.sflag [#allocation3], %s187
          %s189 = sand.u32 %s27, 1
          %s190 = smul.addr %s189, 32
          %s191 = scalar_lea.vmem [#allocation2], %s190
          %s193 = ssub.s32 512, 512
          %194 = vsyncadd %s188, %s193
          %s195 = smul.addr %s17, 128
          %s196 = scalar_lea.hbm %s0, %s195
          %s197 = sshll.u32 %s191, 4
          %s198 = int_to_ptr.vmem [resolvable:$true] %s197
          %203 = dma.hbm_to_vmem [thread:$0]  %s196, 512, %s198, %s188, 256, 128, 8
        $region36: #{tpu_custom_call.1} parent=31 // pred_fallthru
          _
      $region32: #{tpu_custom_call.1} parent=5 // pred_fallthru
        _
      %p204 = scmp.le.s32.totalorder 1, %s17
      %p205 = scmp.lt.s32.totalorder %s17, 3
      %p206 = pnand %p204, %p205
      %p207 = pneg %p206
      // Predicated region
      $region37: #{tpu_custom_call.1} parent=5 // pred_check
        _
      $region38: #{tpu_custom_call.1} parent=5 // pred_check_branch
        %209 = sbr.rel (%p206) target = $region40
      $region39: #{tpu_custom_call.1} parent=5 // pred_region
        %s210 = ssub.s32 %s17, 1
        %s211 = sand.u32 %s30, 1
        %s212 = scalar_lea.sflag [#allocation3], %s211
        %s213 = sand.u32 %s30, 1
        %s214 = smul.addr %s213, 32
        %s215 = scalar_lea.vmem [#allocation2], %s214
        // Predicated region
        $region41: #{tpu_custom_call.1} parent=39 // pred_check
          %p216 = pneg %p43
        $region42: #{tpu_custom_call.1} parent=39 // pred_check_branch
          %218 = sbr.rel (%p216) target = $region44
        $region43: #{tpu_custom_call.1} parent=39 // pred_region
          %219 = dma.done %s212, 512
        $region44: #{tpu_custom_call.1} parent=39 // pred_fallthru
          _
        %s220 = sand.u32 %s30, 1
        %s221 = scalar_lea.sflag [#allocation3], %s220
        %s222 = sand.u32 %s30, 1
        %s223 = smul.addr %s222, 32
        %s224 = scalar_lea.vmem [#allocation2], %s223
        %p225 = pneg %p43
        %p226 = pneg %p40
        %p227 = pneg %p64
        %p228 = pneg %p61
        %p229 = pneg %p85
        %p230 = pneg %p82
        %p231 = pneg %p106
        %p232 = pneg %p103
        %p233 = pneg %p127
        %p234 = pneg %p124
        %p235 = pneg %p153
        %p236 = pneg %p150
        %s237 = sand.u32 %s140, 1
        %s238 = scalar_lea.sflag [#allocation4], %s237
        %s239 = sand.u32 %s140, 1
        %s240 = smul.addr %s239, 8
        %s241 = scalar_lea.vmem [#allocation5], %s240
        %v242 = vld [vmem:[%s1] sm:$0xff]
        %v243 = vld [vmem:[%s1 + $0x8] sm:$0xff]
        %v244 = vld [vmem:[%s215] sm:$0xff]
        %v245 = vld [vmem:[%s215 + $0x8] sm:$0xff]
        %v246 = vld [vmem:[%s215 + $0x10] sm:$0xff]
        %v247 = vld [vmem:[%s215 + $0x18] sm:$0xff]
        %v248 = vld [vmem:[%s2] sm:$0xff]
        %v249 = vld [vmem:[%s2 + $0x8] sm:$0xff]
        %251 = vset.pattern.permute.xlu0 0
        %252 = vperm.xlu0 %251, %v248
        %v253 = vpop.permute.xlu0 %252
        %256 = vset.pattern.permute.xlu0 0
        %257 = vperm.xlu0 %256, %v249
        %v258 = vpop.permute.xlu0 %257
        %vm260 = vcmask 261120
        %v262 = vsel %vm260, %v242, 0
        %v265 = vsel %vm260, %v243, 0
        %267 = vmatprep.subr.mxu0 0.0
        %268 = vmatpush1.msra.mxu0 %v244
        %269 = vmatprep.subr.mxu0 0.0
        %270 = vmatpush1.msra.mxu0 %v245
        %271 = vmatprep.subr.mxu0 0.0
        %272 = vmatpush1.msra.mxu0 %v246
        %273 = vmatprep.subr.mxu0 0.0
        %274 = vmatpush1.msra.mxu0 %v247
        %275 = vmatprep.subr.mxu0 0.0
        %276 = vmatpush1.msra.mxu0 0.0
        %277 = vmatprep.subr.mxu0 0.0
        %278 = vmatpush1.msra.mxu0 0.0
        %279 = vmatprep.subr.mxu0 0.0
        %280 = vmatpush1.msra.mxu0 0.0
        %281 = vmatprep.subr.mxu0 0.0
        %282 = vmatpush1.msra.mxu0 0.0
        %283 = vmatprep.subr.mxu0 0.0
        %284 = vmatpush1.msra.mxu0 0.0
        %285 = vmatprep.subr.mxu0 0.0
        %286 = vmatpush1.msra.mxu0 0.0
        %287 = vmatprep.subr.mxu0 0.0
        %288 = vmatpush1.msra.mxu0 0.0
        %289 = vmatprep.subr.mxu0 0.0
        %290 = vmatpush1.msra.mxu0 0.0
        %291 = vmatprep.subr.mxu0 0.0
        %292 = vmatpush1.msra.mxu0 0.0
        %293 = vmatprep.subr.mxu0 0.0
        %294 = vmatpush1.msra.mxu0 0.0
        %295 = vmatprep.subr.mxu0 0.0
        %296 = vmatpush1.msra.mxu0 0.0
        %297 = vmatprep.subr.mxu0 0.0
        %298 = vmatpush1.msra.mxu0 0.0
        %299 = vmatprep.subr.mxu0 0.0
        %300 = vmatpush1.msra.mxu0 0.0
        %301 = vmatprep.subr.mxu0 0.0
        %302 = vmatpush1.msra.mxu0 0.0
        %303 = vmatprep.subr.mxu0 0.0
        %304 = vmatpush1.msra.mxu0 0.0
        %305 = vmatprep.subr.mxu0 0.0
        %306 = vmatpush1.msra.mxu0 0.0
        %307 = vmatprep.subr.mxu0 0.0
        %308 = vmatpush1.msra.mxu0 0.0
        %309 = vmatprep.subr.mxu0 0.0
        %310 = vmatpush1.msra.mxu0 0.0
        %311 = vmatprep.subr.mxu0 0.0
        %312 = vmatpush1.msra.mxu0 0.0
        %313 = vmatprep.subr.mxu0 0.0
        %314 = vmatpush1.msra.mxu0 0.0
        %315 = vmatprep.subr.mxu0 0.0
        %316 = vmatpush1.msra.mxu0 0.0
        %317 = vmatprep.subr.mxu0 0.0
        %318 = vmatpush1.msra.mxu0 0.0
        %319 = vmatprep.subr.mxu0 0.0
        %320 = vmatpush1.msra.mxu0 0.0
        %321 = vmatprep.subr.mxu0 0.0
        %322 = vmatpush1.msra.mxu0 0.0
        %323 = vmatprep.subr.mxu0 0.0
        %324 = vmatpush1.msra.mxu0 0.0
        %325 = vmatprep.subr.mxu0 0.0
        %326 = vmatpush1.msra.mxu0 0.0
        %327 = vmatprep.subr.mxu0 0.0
        %328 = vmatpush1.msra.mxu0 0.0
        %329 = vmatprep.subr.mxu0 0.0
        %330 = vmatpush1.msra.mxu0 0.0
        %331 = vmatprep.mubr.f32.mxu0 0.0
        %332 = vmatmul.mubr.f32.gmra.mrb[0].mxu0 %v262
        %v333 = vpop.f32.mrb[0].mxu0
        %v334 = vadd.f32 %v253, %v333
        %v335 = vpop.f32.mrb[0].mxu0
        %336 = vmatprep.mubr.f32.mxu0 0.0
        %337 = vmatmul.mubr.f32.gmra.mrb[0].mxu0 %v265
        %v338 = vpop.f32.mrb[0].mxu0
        %v339 = vadd.f32 %v258, %v338
        %v340 = vpop.f32.mrb[0].mxu0
        %341 = vdwg.mxu0
        %v342 = vmax.f32 %v334, 0.0
        %v343 = vmax.f32 %v339, 0.0
        %v344 = vld [vmem:[%s3] sm:$0xff]
        %v345 = vld [vmem:[%s4] sm:$0xff]
        %347 = vset.pattern.permute.xlu0 0
        %348 = vperm.xlu0 %347, %v345
        %v349 = vpop.permute.xlu0 %348
        %vm351 = vcmask 130048
        %v353 = vsel %vm351, %v344, 0
        %355 = vmatprep.subr.mxu0 0.0
        %356 = vmatpush1.msra.mxu0 %v342
        %357 = vmatprep.subr.mxu0 0.0
        %358 = vmatpush1.msra.mxu0 %v343
        %359 = vmatprep.subr.mxu0 0.0
        %360 = vmatpush1.msra.mxu0 0.0
        %361 = vmatprep.subr.mxu0 0.0
        %362 = vmatpush1.msra.mxu0 0.0
        %363 = vmatprep.subr.mxu0 0.0
        %364 = vmatpush1.msra.mxu0 0.0
        %365 = vmatprep.subr.mxu0 0.0
        %366 = vmatpush1.msra.mxu0 0.0
        %367 = vmatprep.subr.mxu0 0.0
        %368 = vmatpush1.msra.mxu0 0.0
        %369 = vmatprep.subr.mxu0 0.0
        %370 = vmatpush1.msra.mxu0 0.0
        %371 = vmatprep.subr.mxu0 0.0
        %372 = vmatpush1.msra.mxu0 0.0
        %373 = vmatprep.subr.mxu0 0.0
        %374 = vmatpush1.msra.mxu0 0.0
        %375 = vmatprep.subr.mxu0 0.0
        %376 = vmatpush1.msra.mxu0 0.0
        %377 = vmatprep.subr.mxu0 0.0
        %378 = vmatpush1.msra.mxu0 0.0
        %379 = vmatprep.subr.mxu0 0.0
        %380 = vmatpush1.msra.mxu0 0.0
        %381 = vmatprep.subr.mxu0 0.0
        %382 = vmatpush1.msra.mxu0 0.0
        %383 = vmatprep.subr.mxu0 0.0
        %384 = vmatpush1.msra.mxu0 0.0
        %385 = vmatprep.subr.mxu0 0.0
        %386 = vmatpush1.msra.mxu0 0.0
        %387 = vmatprep.subr.mxu0 0.0
        %388 = vmatpush1.msra.mxu0 0.0
        %389 = vmatprep.subr.mxu0 0.0
        %390 = vmatpush1.msra.mxu0 0.0
        %391 = vmatprep.subr.mxu0 0.0
        %392 = vmatpush1.msra.mxu0 0.0
        %393 = vmatprep.subr.mxu0 0.0
        %394 = vmatpush1.msra.mxu0 0.0
        %395 = vmatprep.subr.mxu0 0.0
        %396 = vmatpush1.msra.mxu0 0.0
        %397 = vmatprep.subr.mxu0 0.0
        %398 = vmatpush1.msra.mxu0 0.0
        %399 = vmatprep.subr.mxu0 0.0
        %400 = vmatpush1.msra.mxu0 0.0
        %401 = vmatprep.subr.mxu0 0.0
        %402 = vmatpush1.msra.mxu0 0.0
        %403 = vmatprep.subr.mxu0 0.0
        %404 = vmatpush1.msra.mxu0 0.0
        %405 = vmatprep.subr.mxu0 0.0
        %406 = vmatpush1.msra.mxu0 0.0
        %407 = vmatprep.subr.mxu0 0.0
        %408 = vmatpush1.msra.mxu0 0.0
        %409 = vmatprep.subr.mxu0 0.0
        %410 = vmatpush1.msra.mxu0 0.0
        %411 = vmatprep.subr.mxu0 0.0
        %412 = vmatpush1.msra.mxu0 0.0
        %413 = vmatprep.subr.mxu0 0.0
        %414 = vmatpush1.msra.mxu0 0.0
        %415 = vmatprep.subr.mxu0 0.0
        %416 = vmatpush1.msra.mxu0 0.0
        %417 = vmatprep.subr.mxu0 0.0
        %418 = vmatpush1.msra.mxu0 0.0
        %419 = vmatprep.mubr.f32.mxu0 0.0
        %420 = vmatmul.mubr.f32.gmra.mrb[0].mxu0 %v353
        %v421 = vpop.f32.mrb[0].mxu0
        %v422 = vadd.f32 %v349, %v421
        %v423 = vpop.f32.mrb[0].mxu0
        %424 = vdwg.mxu0
        %v425 = vmul.f32 %v422, 1.442695
        %v426 = vpow.pop %v425
        %427 = vst [vmem:[%s241] sm:$0xff] %v426
        %s428 = sand.u32 %s140, 1
        %s429 = scalar_lea.sflag [#allocation4], %s428
        %s430 = sand.u32 %s140, 1
        %s431 = smul.addr %s430, 8
        %s432 = scalar_lea.vmem [#allocation5], %s431
        // Predicated region
        $region45: #{tpu_custom_call.1} parent=39 // pred_check
          %p433 = pneg %p150
        $region46: #{tpu_custom_call.1} parent=39 // pred_check_branch
          %435 = sbr.rel (%p433) target = $region48
        $region47: #{tpu_custom_call.1} parent=39 // pred_region
          %s437 = ssub.s32 128, 128
          %438 = vsyncadd %s429, %s437
          %s439 = smul.addr %s22, 128
          %s440 = scalar_lea.hbm %s5, %s439
          %s442 = sshll.u32 %s432, 4
          %s443 = int_to_ptr.vmem [resolvable:$true] %s442
          %445 = dma.vmem_to_hbm [thread:$0]  %s443, 128, %s440, %s429
        $region48: #{tpu_custom_call.1} parent=39 // pred_fallthru
          _
      $region40: #{tpu_custom_call.1} parent=5 // pred_fallthru
        _
      %p446 = scmp.le.s32.totalorder 2, %s17
      // Predicated region
      $region49: #{tpu_custom_call.1} parent=5 // pred_check
        %p447 = pneg %p446
      $region50: #{tpu_custom_call.1} parent=5 // pred_check_branch
        %449 = sbr.rel (%p447) target = $region52
      $region51: #{tpu_custom_call.1} parent=5 // pred_region
        %s450 = ssub.s32 %s17, 2
        // Predicated region
        $region53: #{tpu_custom_call.1} parent=51 // pred_check
          %p451 = pneg %p156
        $region54: #{tpu_custom_call.1} parent=51 // pred_check_branch
          %453 = sbr.rel (%p451) target = $region56
        $region55: #{tpu_custom_call.1} parent=51 // pred_region
          %s454 = sand.u32 %s141, 1
          %s455 = scalar_lea.sflag [#allocation4], %s454
          %s456 = sand.u32 %s141, 1
          %s457 = smul.addr %s456, 8
          %s458 = scalar_lea.vmem [#allocation5], %s457
          %459 = dma.done %s455, 128
        $region56: #{tpu_custom_call.1} parent=51 // pred_fallthru
          _
      $region52: #{tpu_custom_call.1} parent=5 // pred_fallthru
        _
    $region6: #{tpu_custom_call.1} parent=1 // loop_footer
      %s21 = sadd.s32 1, %s17
    $region7: #{tpu_custom_call.1} parent=1 // loop_footer_branch
      %16 = sbr.rel target = $region3
    $region8: #{tpu_custom_call.1} parent=1 // loop_exit
      _
    %460 = vsyncpa [#allocation3], 1
    %s461 = scalar_lea.sflag [#allocation3], 1
    %462 = vsyncpa %s461, 1
    %463 = vsyncpa [#allocation4], 1
    %s464 = scalar_lea.sflag [#allocation4], 1
    %465 = vsyncpa %s464, 1

</llo_original>
